<compile_context>
chip_gen: v5e
topology: v5e:2x2
jax: 0.10.0
libtpu: 0.0.40
codegen_flags: <defaults>
</compile_context>

<pallas_src>
import functools

import jax
import jax.numpy as jnp
from jax.experimental import pallas as pl
from jax.experimental.pallas import tpu as pltpu


NEG_SLOPE = 0.2  # LeakyReLU(0.2)


def _round_up(x, m):
    return (x + m - 1) // m * m


def _cdiv(a, b):
    return (a + b - 1) // b


def _leaky_relu(x):
    return jnp.where(x > 0, x, NEG_SLOPE * x)


def ranknet_kernel(x_ref, w1_ref, b1_ref, w2_ref, b2_ref, w3_ref, b3_ref, o_ref):
    """3-layer MLP on one (tile_m, D_in) batch tile, entirely in VMEM."""
    # Layer 1: downcast the streamed f32 tile to bf16 in-kernel (single MXU
    # pass, f32 accumulation). If x was already bf16 this is a no-op.
    x = x_ref[...]
    if x.dtype != jnp.bfloat16:
        x = x.astype(jnp.bfloat16)
    h = jnp.dot(x, w1_ref[...], preferred_element_type=jnp.float32)
    h = _leaky_relu(h + b1_ref[...])

    # Layer 2: (tile_m, H1) @ (H1, H2) + (1, H2), all f32.
    h = jnp.dot(h, w2_ref[...], preferred_element_type=jnp.float32)
    h = _leaky_relu(h + b2_ref[...])

    # Output head: (tile_m, H2) @ (H2, 1) + scalar bias (SMEM), sigmoid * 4.
    logits = jnp.dot(h, w3_ref[...], preferred_element_type=jnp.float32) + b3_ref[0, 0]
    scores = jax.nn.sigmoid(logits) * 4.0                     # (tile_m, 1) f32

    # Lane-dense store: transpose the skinny column once, then one full-lane
    # unmasked row store instead of tile_m masked 1-lane stores.
    o_ref[...] = scores.T.reshape(o_ref.shape)                # (1, 1, tile_m)


@functools.partial(jax.jit, static_argnames=("block_m",))
def listwise_ranknet_forward(x, params, block_m=2048):
    """x: (N, D_in) float32 (or bfloat16). params: (in,out) weights, (1,out) biases."""
    w1, b1 = params["w1"], params["b1"]
    w2, b2 = params["w2"], params["b2"]
    w3, b3 = params["w3"], params["b3"]

    n, d_in = x.shape
    h1 = w1.shape[1]
    h2 = w2.shape[1]
    d_out = w3.shape[1]

    # W1 in bf16 (tiny, 501x64, VMEM-resident). x itself is NOT touched on the
    # host — no extra HBM read/write pass over the feature matrix.
    w1 = w1.astype(jnp.bfloat16)

    # ---- batch tiling ------------------------------------------------------
    # tile_m is a multiple of 128 so the lane-dense output row is unmasked.
    block_m = max(_round_up(block_m, 128), 128)
    tile_m = min(block_m, _round_up(n, 128))
    # Guarantee >= 2 grid steps when the batch is big enough so v7x's two
    # TensorCores both get work on the "parallel" batch axis.
    if n > 128:
        tile_m = min(tile_m, _round_up(_cdiv(n, 2), 128))
    num_tiles = _cdiv(n, tile_m)

    # Only tiny batches (n < 128 => n < tile_m) need a host batch pad so no
    # block exceeds the array extent; larger ragged batches use the clipped
    # partial last block (garbage tail rows are sliced off below).
    if n < tile_m:
        x = jnp.pad(x, ((0, tile_m - n), (0, 0)))

    in_specs = [
        pl.BlockSpec((tile_m, d_in), lambda i: (i, 0)),           # x tile (unpadded K)
        pl.BlockSpec((d_in, h1), lambda i: (0, 0)),               # W1 (bf16, resident)
        pl.BlockSpec((1, h1), lambda i: (0, 0)),                  # b1
        pl.BlockSpec((h1, h2), lambda i: (0, 0)),                 # W2
        pl.BlockSpec((1, h2), lambda i: (0, 0)),                  # b2
        pl.BlockSpec((h2, d_out), lambda i: (0, 0)),              # W3
        pl.BlockSpec(memory_space=pltpu.MemorySpace.SMEM),        # b3 scalar
    ]
    # Lane-dense output: one (1, 1, tile_m) row per grid step, f32.
    out_specs = pl.BlockSpec((1, 1, tile_m), lambda i: (i, 0, 0))
    out_shape = jax.ShapeDtypeStruct((num_tiles, 1, tile_m), jnp.float32)

    rows = num_tiles * tile_m
    bytes_accessed = (
        x.size * x.dtype.itemsize                                  # streamed x
        + w1.size * w1.dtype.itemsize
        + (w2.size + w3.size + b1.size + b2.size + b3.size) * 4
        + rows * 4                                                 # f32 output
    )
    cost = pl.CostEstimate(
        flops=2 * rows * (d_in * h1 + h1 * h2 + h2 * d_out),
        transcendentals=rows,                 # one exp per sigmoid
        bytes_accessed=int(bytes_accessed),
    )

    out = pl.pallas_call(
        ranknet_kernel,
        out_shape=out_shape,
        grid_spec=pltpu.PrefetchScalarGridSpec(
            num_scalar_prefetch=0,
            grid=(num_tiles,),
            in_specs=in_specs,
            out_specs=out_specs,
        ),
        compiler_params=pltpu.CompilerParams(
            dimension_semantics=("parallel",),      # batch axis shards across TCs
            vmem_limit_bytes=32 * 1024 * 1024,      # safe on v5e/v6e/v7x
        ),
        cost_estimate=cost,
    )(x, w1, b1, w2, b2, w3, b3)

    # (num_tiles, 1, tile_m) -> (n, 1): row-major unravel, drop padded/garbage rows.
    return out.reshape(num_tiles * tile_m, 1)[:n]


def init_params(key, input_dim=501, architecture=(64, 32), output_dim=1):
    """PyTorch-style uniform(-1/sqrt(fan_in), 1/sqrt(fan_in)) init.

    Weights stored as (in_features, out_features); biases as (1, out_features).
    """
    dims = [input_dim, *architecture, output_dim]
    params = {}
    for idx in range(len(dims) - 1):
        fan_in, fan_out = dims[idx], dims[idx + 1]
        key, kw, kb = jax.random.split(key, 3)
        bound = 1.0 / jnp.sqrt(jnp.float32(fan_in))
        params[f"w{idx + 1}"] = jax.random.uniform(
            kw, (fan_in, fan_out), jnp.float32, -bound, bound
        )
        params[f"b{idx + 1}"] = jax.random.uniform(
            kb, (1, fan_out), jnp.float32, -bound, bound
        )
    return params


def reference_forward(x, params):
    """Pure-JAX f32 reference mirroring the PyTorch forward."""
    h = jnp.dot(x, params["w1"]) + params["b1"]
    h = jnp.where(h > 0, h, NEG_SLOPE * h)
    h = jnp.dot(h, params["w2"]) + params["b2"]
    h = jnp.where(h > 0, h, NEG_SLOPE * h)
    logits = jnp.dot(h, params["w3"]) + params["b3"]
    return jax.nn.sigmoid(logits) * 4.0


if __name__ == "__main__":
    key = jax.random.PRNGKey(0)
    key, kx = jax.random.split(key)

    # Small list of 8 documents, each with the module's 501 ranking features.
    N, D_IN = 8, 501
    x = jax.random.normal(kx, (N, D_IN), jnp.float32)
    params = init_params(key, input_dim=D_IN, architecture=(64, 32), output_dim=1)

    out = jax.block_until_ready(listwise_ranknet_forward(x, params))
    ref = reference_forward(x, params)
    assert out.shape == (N, 1), out.shape
    err = float(jnp.max(jnp.abs(out - ref)))
    assert err < 3e-2, f"max abs err = {err}"   # bf16 x/W1 layer-1 rounding only

    # Also exercise the multi-tile + ragged-batch path (2 grid steps, the
    # second a clipped partial block).
    key, kx2 = jax.random.split(key)
    N2 = 300
    x2 = jax.random.normal(kx2, (N2, D_IN), jnp.float32)
    out2 = jax.block_until_ready(listwise_ranknet_forward(x2, params))
    ref2 = reference_forward(x2, params)
    assert out2.shape == (N2, 1), out2.shape
    err2 = float(jnp.max(jnp.abs(out2 - ref2)))
    assert err2 < 3e-2, f"max abs err = {err2}"

    print("KERNEL_OK")
</pallas_src>

<mosaic_0001>
module attributes {stable_mosaic.version = 11 : i64} {
  func.func @ranknet_kernel(%arg0: i32, %arg1: memref<128x501xf32, #tpu.memory_space<vmem>>, %arg2: memref<501x64xbf16, #tpu.memory_space<vmem>>, %arg3: memref<1x64xf32, #tpu.memory_space<vmem>>, %arg4: memref<64x32xf32, #tpu.memory_space<vmem>>, %arg5: memref<1x32xf32, #tpu.memory_space<vmem>>, %arg6: memref<32x1xf32, #tpu.memory_space<vmem>>, %arg7: memref<1x1xf32, #tpu.memory_space<smem>>, %arg8: memref<1x1x128xf32, #tpu.memory_space<vmem>>) attributes {dimension_semantics = [#tpu.dimension_semantics<parallel>], iteration_bounds = array<i64: 1>, scalar_prefetch = 0 : i64, scratch_operands = 0 : i64, tpu.core_type = #tpu.core_type<tc>, window_params = [{transform_indices = @transform_0, window_bounds = array<i64: 128, 501>}, {pipeline_mode = #tpu.pipeline_mode<synchronous>, transform_indices = @transform_1, window_bounds = array<i64: 501, 64>}, {pipeline_mode = #tpu.pipeline_mode<synchronous>, transform_indices = @transform_2, window_bounds = array<i64: 1, 64>}, {pipeline_mode = #tpu.pipeline_mode<synchronous>, transform_indices = @transform_3, window_bounds = array<i64: 64, 32>}, {pipeline_mode = #tpu.pipeline_mode<synchronous>, transform_indices = @transform_4, window_bounds = array<i64: 1, 32>}, {pipeline_mode = #tpu.pipeline_mode<synchronous>, transform_indices = @transform_5, window_bounds = array<i64: 32, 1>}, {transform_indices = @transform_6, window_bounds = array<i64: 1, 1>}, {transform_indices = @transform_7, window_bounds = array<i64: 1, 1, 128>}]} {
    %c0 = arith.constant 0 : index
    %c0_0 = arith.constant 0 : index
    %0 = vector.load %arg1[%c0, %c0_0] : memref<128x501xf32, #tpu.memory_space<vmem>>, vector<128x501xf32>
    %1 = arith.truncf %0 : vector<128x501xf32> to vector<128x501xbf16>
    %c0_1 = arith.constant 0 : index
    %c0_2 = arith.constant 0 : index
    %2 = vector.load %arg2[%c0_1, %c0_2] : memref<501x64xbf16, #tpu.memory_space<vmem>>, vector<501x64xbf16>
    %cst = arith.constant dense<0.000000e+00> : vector<128x64xf32>
    %3 = tpu.matmul %1, %2, %cst {dimension_numbers = #tpu.dot_dimension_numbers<[1], [0], [0], [1], [0, 0, 1, 1], [], []>} : vector<128x501xbf16>, vector<501x64xbf16>, vector<128x64xf32> -> vector<128x64xf32>
    %c0_3 = arith.constant 0 : index
    %c0_4 = arith.constant 0 : index
    %4 = vector.load %arg3[%c0_3, %c0_4] : memref<1x64xf32, #tpu.memory_space<vmem>>, vector<1x64xf32>
    %5 = vector.broadcast %4 : vector<1x64xf32> to vector<128x64xf32>
    %6 = arith.addf %3, %5 : vector<128x64xf32>
    %cst_5 = arith.constant 0.000000e+00 : f32
    %7 = vector.broadcast %cst_5 : f32 to vector<128x64xf32>
    %8 = arith.cmpf ogt, %6, %7 : vector<128x64xf32>
    %cst_6 = arith.constant 2.000000e-01 : f32
    %9 = vector.broadcast %cst_6 : f32 to vector<128x64xf32>
    %10 = arith.mulf %9, %6 : vector<128x64xf32>
    %11 = arith.select %8, %6, %10 : vector<128x64xi1>, vector<128x64xf32>
    %c0_7 = arith.constant 0 : index
    %c0_8 = arith.constant 0 : index
    %12 = vector.load %arg4[%c0_7, %c0_8] : memref<64x32xf32, #tpu.memory_space<vmem>>, vector<64x32xf32>
    %cst_9 = arith.constant dense<0.000000e+00> : vector<128x32xf32>
    %13 = tpu.matmul %11, %12, %cst_9 {dimension_numbers = #tpu.dot_dimension_numbers<[1], [0], [0], [1], [0, 0, 1, 1], [], []>} : vector<128x64xf32>, vector<64x32xf32>, vector<128x32xf32> -> vector<128x32xf32>
    %c0_10 = arith.constant 0 : index
    %c0_11 = arith.constant 0 : index
    %14 = vector.load %arg5[%c0_10, %c0_11] : memref<1x32xf32, #tpu.memory_space<vmem>>, vector<1x32xf32>
    %15 = vector.broadcast %14 : vector<1x32xf32> to vector<128x32xf32>
    %16 = arith.addf %13, %15 : vector<128x32xf32>
    %cst_12 = arith.constant 0.000000e+00 : f32
    %17 = vector.broadcast %cst_12 : f32 to vector<128x32xf32>
    %18 = arith.cmpf ogt, %16, %17 : vector<128x32xf32>
    %cst_13 = arith.constant 2.000000e-01 : f32
    %19 = vector.broadcast %cst_13 : f32 to vector<128x32xf32>
    %20 = arith.mulf %19, %16 : vector<128x32xf32>
    %21 = arith.select %18, %16, %20 : vector<128x32xi1>, vector<128x32xf32>
    %c0_14 = arith.constant 0 : index
    %c0_15 = arith.constant 0 : index
    %22 = vector.load %arg6[%c0_14, %c0_15] : memref<32x1xf32, #tpu.memory_space<vmem>>, vector<32x1xf32>
    %cst_16 = arith.constant dense<0.000000e+00> : vector<128x1xf32>
    %23 = tpu.matmul %21, %22, %cst_16 {dimension_numbers = #tpu.dot_dimension_numbers<[1], [0], [0], [1], [0, 0, 1, 1], [], []>} : vector<128x32xf32>, vector<32x1xf32>, vector<128x1xf32> -> vector<128x1xf32>
    %c0_17 = arith.constant 0 : index
    %c0_18 = arith.constant 0 : index
    %24 = memref.load %arg7[%c0_17, %c0_18] : memref<1x1xf32, #tpu.memory_space<smem>>
    %25 = vector.broadcast %24 : f32 to vector<128x1xf32>
    %26 = arith.addf %23, %25 : vector<128x1xf32>
    %27 = arith.negf %26 : vector<128x1xf32>
    %28 = math.exp %27 : vector<128x1xf32>
    %cst_19 = arith.constant 1.000000e+00 : f32
    %29 = vector.broadcast %cst_19 : f32 to vector<128x1xf32>
    %30 = arith.addf %29, %28 : vector<128x1xf32>
    %31 = arith.divf %29, %30 : vector<128x1xf32>
    %cst_20 = arith.constant 4.000000e+00 : f32
    %32 = vector.broadcast %cst_20 : f32 to vector<128x1xf32>
    %33 = arith.mulf %31, %32 : vector<128x1xf32>
    %34 = tpu.transpose %33, [1, 0] : vector<128x1xf32> -> vector<1x128xf32>
    %35 = vector.shape_cast %34 : vector<1x128xf32> to vector<1x1x128xf32>
    %c0_21 = arith.constant 0 : index
    %c0_22 = arith.constant 0 : index
    %c0_23 = arith.constant 0 : index
    %36 = vector.load %arg8[%c0_21, %c0_22, %c0_23] : memref<1x1x128xf32, #tpu.memory_space<vmem>>, vector<1x1x128xf32>
    tpu.vector_store %arg8[%c0_21, %c0_22, %c0_23], %35 {strides = array<i32>} : memref<1x1x128xf32, #tpu.memory_space<vmem>>, vector<1x1x128xf32>,
    return
  }
  func.func @transform_0(%arg0: i32) -> (i32, i32) {
    %c0_i32 = arith.constant 0 : i32
    %c0_i32_0 = arith.constant 0 : i32
    return %arg0, %c0_i32 : i32, i32
  }
  func.func @transform_1(%arg0: i32) -> (i32, i32) {
    %c0_i32 = arith.constant 0 : i32
    %c0_i32_0 = arith.constant 0 : i32
    %c0_i32_1 = arith.constant 0 : i32
    return %c0_i32, %c0_i32_0 : i32, i32
  }
  func.func @transform_2(%arg0: i32) -> (i32, i32) {
    %c0_i32 = arith.constant 0 : i32
    %c0_i32_0 = arith.constant 0 : i32
    %c0_i32_1 = arith.constant 0 : i32
    return %c0_i32, %c0_i32_0 : i32, i32
  }
  func.func @transform_3(%arg0: i32) -> (i32, i32) {
    %c0_i32 = arith.constant 0 : i32
    %c0_i32_0 = arith.constant 0 : i32
    %c0_i32_1 = arith.constant 0 : i32
    return %c0_i32, %c0_i32_0 : i32, i32
  }
  func.func @transform_4(%arg0: i32) -> (i32, i32) {
    %c0_i32 = arith.constant 0 : i32
    %c0_i32_0 = arith.constant 0 : i32
    %c0_i32_1 = arith.constant 0 : i32
    return %c0_i32, %c0_i32_0 : i32, i32
  }
  func.func @transform_5(%arg0: i32) -> (i32, i32) {
    %c0_i32 = arith.constant 0 : i32
    %c0_i32_0 = arith.constant 0 : i32
    %c0_i32_1 = arith.constant 0 : i32
    return %c0_i32, %c0_i32_0 : i32, i32
  }
  func.func @transform_6(%arg0: i32) -> (i32, i32) {
    %c0_i32 = arith.constant 0 : i32
    %c0_i32_0 = arith.constant 0 : i32
    %c0_i32_1 = arith.constant 0 : i32
    return %c0_i32, %c0_i32_0 : i32, i32
  }
  func.func @transform_7(%arg0: i32) -> (i32, i32, i32) {
    %c0_i32 = arith.constant 0 : i32
    %c0_i32_0 = arith.constant 0 : i32
    %c0_i32_1 = arith.constant 0 : i32
    return %arg0, %c0_i32, %c0_i32_0 : i32, i32, i32
  }
}

</mosaic_0001>

<llo_original>
// kernel: listwise_ranknet_forward.1
$region0: #{listwise_ranknet_forward.1}
  #allocation0 [shape = 'u32[]', space=smem, size = 0x4, offset = 0x4, fixed_abs, tag = 'smem constant byte address 0x4 - core index']
  #allocation1 [shape = 'u32[72,128]{1,0:T(1,128)}', space=vmem, size = 0x9000, scoped, tag = 'internal scratch']
  #allocation2 [shape = 'f32[1,1]{1,0:T(1,128)S(6)}', space=smem, size = 0x200, scoped, tag = 'scoped memory for listwise_ranknet_forward.1']
  %s0 = inlined_call_operand.vmem [shape: f32[128,501], index: 0, kind: input, shape index: {}]
  %s1 = inlined_call_operand.vmem [shape: bf16[501,64], index: 1, kind: input, shape index: {}]
  %s2 = inlined_call_operand.vmem [shape: f32[1,64], index: 2, kind: input, shape index: {}]
  %s3 = inlined_call_operand.vmem [shape: f32[64,32], index: 3, kind: input, shape index: {}]
  %s4 = inlined_call_operand.vmem [shape: f32[1,32], index: 4, kind: input, shape index: {}]
  %s5 = inlined_call_operand.vmem [shape: f32[32,1], index: 5, kind: input, shape index: {}]
  %s6 = inlined_call_operand.<no memory space> [shape: f32[1,1], index: 6, kind: input, shape index: {}]
  %s7 = inlined_call_operand.vmem [shape: f32[1,1,128], index: 7, kind: output, shape index: {}]
  %s8 = sld [smem:[#allocation0]]
  $region38: #{listwise_ranknet_forward.1} parent=0
    _
  %s10 = ssub.s32 1, %s8
  %s11 = scalar_select 0, %s10, %s8
  %12 = sst [smem:[#allocation2]] %s6
  // Predicated region
  $region2: #{listwise_ranknet_forward.1} parent=0 // pred_check
    _
  $region3: #{listwise_ranknet_forward.1} parent=0 // pred_check_branch
    %14 = sbr.rel (0) target = $region5
  $region4: #{listwise_ranknet_forward.1} parent=0 // pred_region
    _
  $region5: #{listwise_ranknet_forward.1} parent=0 // pred_fallthru
    _
  // Predicated region
  $region6: #{listwise_ranknet_forward.1} parent=0 // pred_check
    _
  $region7: #{listwise_ranknet_forward.1} parent=0 // pred_check_branch
    %16 = sbr.rel (0) target = $region9
  $region8: #{listwise_ranknet_forward.1} parent=0 // pred_region
    _
  $region9: #{listwise_ranknet_forward.1} parent=0 // pred_fallthru
    _
  // Predicated region
  $region10: #{listwise_ranknet_forward.1} parent=0 // pred_check
    _
  $region11: #{listwise_ranknet_forward.1} parent=0 // pred_check_branch
    %18 = sbr.rel (0) target = $region13
  $region12: #{listwise_ranknet_forward.1} parent=0 // pred_region
    _
  $region13: #{listwise_ranknet_forward.1} parent=0 // pred_fallthru
    _
  // Predicated region
  $region14: #{listwise_ranknet_forward.1} parent=0 // pred_check
    _
  $region15: #{listwise_ranknet_forward.1} parent=0 // pred_check_branch
    %20 = sbr.rel (0) target = $region17
  $region16: #{listwise_ranknet_forward.1} parent=0 // pred_region
    _
  $region17: #{listwise_ranknet_forward.1} parent=0 // pred_fallthru
    _
  // Predicated region
  $region18: #{listwise_ranknet_forward.1} parent=0 // pred_check
    _
  $region19: #{listwise_ranknet_forward.1} parent=0 // pred_check_branch
    %22 = sbr.rel (0) target = $region21
  $region20: #{listwise_ranknet_forward.1} parent=0 // pred_region
    _
  $region21: #{listwise_ranknet_forward.1} parent=0 // pred_fallthru
    _
  // Predicated region
  $region22: #{listwise_ranknet_forward.1} parent=0 // pred_check
    _
  $region23: #{listwise_ranknet_forward.1} parent=0 // pred_check_branch
    %24 = sbr.rel (0) target = $region25
  $region24: #{listwise_ranknet_forward.1} parent=0 // pred_region
    _
  $region25: #{listwise_ranknet_forward.1} parent=0 // pred_fallthru
    _
  // Predicated region
  $region26: #{listwise_ranknet_forward.1} parent=0 // pred_check
    _
  $region27: #{listwise_ranknet_forward.1} parent=0 // pred_check_branch
    %26 = sbr.rel (0) target = $region29
  $region28: #{listwise_ranknet_forward.1} parent=0 // pred_region
    _
  $region29: #{listwise_ranknet_forward.1} parent=0 // pred_fallthru
    _
  %v27 = vld [vmem:[%s0] sm:$0xff]
  %v28 = vld [vmem:[%s0 + $0x8] sm:$0xff]
  %v29 = vld [vmem:[%s0 + $0x10] sm:$0xff]
  %v30 = vld [vmem:[%s0 + $0x18] sm:$0xff]
  %v31 = vld [vmem:[%s0 + $0x20] sm:$0xff]
  %v32 = vld [vmem:[%s0 + $0x28] sm:$0xff]
  %v33 = vld [vmem:[%s0 + $0x30] sm:$0xff]
  %v34 = vld [vmem:[%s0 + $0x38] sm:$0xff]
  %v35 = vld [vmem:[%s0 + $0x40] sm:$0xff]
  %v36 = vld [vmem:[%s0 + $0x48] sm:$0xff]
  %v37 = vld [vmem:[%s0 + $0x50] sm:$0xff]
  %v38 = vld [vmem:[%s0 + $0x58] sm:$0xff]
  %v39 = vld [vmem:[%s0 + $0x60] sm:$0xff]
  %v40 = vld [vmem:[%s0 + $0x68] sm:$0xff]
  %v41 = vld [vmem:[%s0 + $0x70] sm:$0xff]
  %v42 = vld [vmem:[%s0 + $0x78] sm:$0xff]
  %v43 = vld [vmem:[%s0 + $0x80] sm:$0xff]
  %v44 = vld [vmem:[%s0 + $0x88] sm:$0xff]
  %v45 = vld [vmem:[%s0 + $0x90] sm:$0xff]
  %v46 = vld [vmem:[%s0 + $0x98] sm:$0xff]
  %v47 = vld [vmem:[%s0 + $0xa0] sm:$0xff]
  %v48 = vld [vmem:[%s0 + $0xa8] sm:$0xff]
  %v49 = vld [vmem:[%s0 + $0xb0] sm:$0xff]
  %v50 = vld [vmem:[%s0 + $0xb8] sm:$0xff]
  %v51 = vld [vmem:[%s0 + $0xc0] sm:$0xff]
  %v52 = vld [vmem:[%s0 + $0xc8] sm:$0xff]
  %v53 = vld [vmem:[%s0 + $0xd0] sm:$0xff]
  %v54 = vld [vmem:[%s0 + $0xd8] sm:$0xff]
  %v55 = vld [vmem:[%s0 + $0xe0] sm:$0xff]
  %v56 = vld [vmem:[%s0 + $0xe8] sm:$0xff]
  %v57 = vld [vmem:[%s0 + $0xf0] sm:$0xff]
  %v58 = vld [vmem:[%s0 + $0xf8] sm:$0xff]
  %v59 = vld [vmem:[%s0 + $0x100] sm:$0xff]
  %v60 = vld [vmem:[%s0 + $0x108] sm:$0xff]
  %v61 = vld [vmem:[%s0 + $0x110] sm:$0xff]
  %v62 = vld [vmem:[%s0 + $0x118] sm:$0xff]
  %v63 = vld [vmem:[%s0 + $0x120] sm:$0xff]
  %v64 = vld [vmem:[%s0 + $0x128] sm:$0xff]
  %v65 = vld [vmem:[%s0 + $0x130] sm:$0xff]
  %v66 = vld [vmem:[%s0 + $0x138] sm:$0xff]
  %v67 = vld [vmem:[%s0 + $0x140] sm:$0xff]
  %v68 = vld [vmem:[%s0 + $0x148] sm:$0xff]
  %v69 = vld [vmem:[%s0 + $0x150] sm:$0xff]
  %v70 = vld [vmem:[%s0 + $0x158] sm:$0xff]
  %v71 = vld [vmem:[%s0 + $0x160] sm:$0xff]
  %v72 = vld [vmem:[%s0 + $0x168] sm:$0xff]
  %v73 = vld [vmem:[%s0 + $0x170] sm:$0xff]
  %v74 = vld [vmem:[%s0 + $0x178] sm:$0xff]
  %v75 = vld [vmem:[%s0 + $0x180] sm:$0xff]
  %v76 = vld [vmem:[%s0 + $0x188] sm:$0xff]
  %v77 = vld [vmem:[%s0 + $0x190] sm:$0xff]
  %v78 = vld [vmem:[%s0 + $0x198] sm:$0xff]
  %v79 = vld [vmem:[%s0 + $0x1a0] sm:$0xff]
  %v80 = vld [vmem:[%s0 + $0x1a8] sm:$0xff]
  %v81 = vld [vmem:[%s0 + $0x1b0] sm:$0xff]
  %v82 = vld [vmem:[%s0 + $0x1b8] sm:$0xff]
  %v83 = vld [vmem:[%s0 + $0x1c0] sm:$0xff]
  %v84 = vld [vmem:[%s0 + $0x1c8] sm:$0xff]
  %v85 = vld [vmem:[%s0 + $0x1d0] sm:$0xff]
  %v86 = vld [vmem:[%s0 + $0x1d8] sm:$0xff]
  %v87 = vld [vmem:[%s0 + $0x1e0] sm:$0xff]
  %v88 = vld [vmem:[%s0 + $0x1e8] sm:$0xff]
  %v89 = vld [vmem:[%s0 + $0x1f0] sm:$0xff]
  %v90 = vld [vmem:[%s0 + $0x1f8] sm:$0xff]
  %v91 = vpack.c.bf16 %v31, %v27
  %v92 = vpack.c.bf16 %v32, %v28
  %v93 = vpack.c.bf16 %v33, %v29
  %v94 = vpack.c.bf16 %v34, %v30
  %v95 = vpack.c.bf16 %v39, %v35
  %v96 = vpack.c.bf16 %v40, %v36
  %v97 = vpack.c.bf16 %v41, %v37
  %v98 = vpack.c.bf16 %v42, %v38
  %v99 = vpack.c.bf16 %v47, %v43
  %v100 = vpack.c.bf16 %v48, %v44
  %v101 = vpack.c.bf16 %v49, %v45
  %v102 = vpack.c.bf16 %v50, %v46
  %v103 = vpack.c.bf16 %v55, %v51
  %v104 = vpack.c.bf16 %v56, %v52
  %v105 = vpack.c.bf16 %v57, %v53
  %v106 = vpack.c.bf16 %v58, %v54
  %v107 = vpack.c.bf16 %v63, %v59
  %v108 = vpack.c.bf16 %v64, %v60
  %v109 = vpack.c.bf16 %v65, %v61
  %v110 = vpack.c.bf16 %v66, %v62
  %v111 = vpack.c.bf16 %v71, %v67
  %v112 = vpack.c.bf16 %v72, %v68
  %v113 = vpack.c.bf16 %v73, %v69
  %v114 = vpack.c.bf16 %v74, %v70
  %v115 = vpack.c.bf16 %v79, %v75
  %v116 = vpack.c.bf16 %v80, %v76
  %v117 = vpack.c.bf16 %v81, %v77
  %v118 = vpack.c.bf16 %v82, %v78
  %v119 = vpack.c.bf16 %v87, %v83
  %v120 = vpack.c.bf16 %v88, %v84
  %v121 = vpack.c.bf16 %v89, %v85
  %v122 = vpack.c.bf16 %v90, %v86
  %v123 = vld [vmem:[%s1] sm:$0xf]
  %v124 = vld [vmem:[%s1 + $0x4] sm:$0xf]
  %v125 = vld [vmem:[%s1 + $0x8] sm:$0xf]
  %v126 = vld [vmem:[%s1 + $0xc] sm:$0xf]
  %v127 = vld [vmem:[%s1 + $0x10] sm:$0xf]
  %v128 = vld [vmem:[%s1 + $0x14] sm:$0xf]
  %v129 = vld [vmem:[%s1 + $0x18] sm:$0xf]
  %v130 = vld [vmem:[%s1 + $0x1c] sm:$0xf]
  %v131 = vld [vmem:[%s1 + $0x20] sm:$0xf]
  %v132 = vld [vmem:[%s1 + $0x24] sm:$0xf]
  %v133 = vld [vmem:[%s1 + $0x28] sm:$0xf]
  %v134 = vld [vmem:[%s1 + $0x2c] sm:$0xf]
  %v135 = vld [vmem:[%s1 + $0x30] sm:$0xf]
  %v136 = vld [vmem:[%s1 + $0x34] sm:$0xf]
  %v137 = vld [vmem:[%s1 + $0x38] sm:$0xf]
  %v138 = vld [vmem:[%s1 + $0x3c] sm:$0xf]
  %v139 = vld [vmem:[%s1 + $0x40] sm:$0xf]
  %v140 = vld [vmem:[%s1 + $0x44] sm:$0xf]
  %v141 = vld [vmem:[%s1 + $0x48] sm:$0xf]
  %v142 = vld [vmem:[%s1 + $0x4c] sm:$0xf]
  %v143 = vld [vmem:[%s1 + $0x50] sm:$0xf]
  %v144 = vld [vmem:[%s1 + $0x54] sm:$0xf]
  %v145 = vld [vmem:[%s1 + $0x58] sm:$0xf]
  %v146 = vld [vmem:[%s1 + $0x5c] sm:$0xf]
  %v147 = vld [vmem:[%s1 + $0x60] sm:$0xf]
  %v148 = vld [vmem:[%s1 + $0x64] sm:$0xf]
  %v149 = vld [vmem:[%s1 + $0x68] sm:$0xf]
  %v150 = vld [vmem:[%s1 + $0x6c] sm:$0xf]
  %v151 = vld [vmem:[%s1 + $0x70] sm:$0xf]
  %v152 = vld [vmem:[%s1 + $0x74] sm:$0xf]
  %v153 = vld [vmem:[%s1 + $0x78] sm:$0xf]
  %v154 = vld [vmem:[%s1 + $0x7c] sm:$0xf]
  %v155 = vld [vmem:[%s1 + $0x80] sm:$0xf]
  %v156 = vld [vmem:[%s1 + $0x84] sm:$0xf]
  %v157 = vld [vmem:[%s1 + $0x88] sm:$0xf]
  %v158 = vld [vmem:[%s1 + $0x8c] sm:$0xf]
  %v159 = vld [vmem:[%s1 + $0x90] sm:$0xf]
  %v160 = vld [vmem:[%s1 + $0x94] sm:$0xf]
  %v161 = vld [vmem:[%s1 + $0x98] sm:$0xf]
  %v162 = vld [vmem:[%s1 + $0x9c] sm:$0xf]
  %v163 = vld [vmem:[%s1 + $0xa0] sm:$0xf]
  %v164 = vld [vmem:[%s1 + $0xa4] sm:$0xf]
  %v165 = vld [vmem:[%s1 + $0xa8] sm:$0xf]
  %v166 = vld [vmem:[%s1 + $0xac] sm:$0xf]
  %v167 = vld [vmem:[%s1 + $0xb0] sm:$0xf]
  %v168 = vld [vmem:[%s1 + $0xb4] sm:$0xf]
  %v169 = vld [vmem:[%s1 + $0xb8] sm:$0xf]
  %v170 = vld [vmem:[%s1 + $0xbc] sm:$0xf]
  %v171 = vld [vmem:[%s1 + $0xc0] sm:$0xf]
  %v172 = vld [vmem:[%s1 + $0xc4] sm:$0xf]
  %v173 = vld [vmem:[%s1 + $0xc8] sm:$0xf]
  %v174 = vld [vmem:[%s1 + $0xcc] sm:$0xf]
  %v175 = vld [vmem:[%s1 + $0xd0] sm:$0xf]
  %v176 = vld [vmem:[%s1 + $0xd4] sm:$0xf]
  %v177 = vld [vmem:[%s1 + $0xd8] sm:$0xf]
  %v178 = vld [vmem:[%s1 + $0xdc] sm:$0xf]
  %v179 = vld [vmem:[%s1 + $0xe0] sm:$0xf]
  %v180 = vld [vmem:[%s1 + $0xe4] sm:$0xf]
  %v181 = vld [vmem:[%s1 + $0xe8] sm:$0xf]
  %v182 = vld [vmem:[%s1 + $0xec] sm:$0xf]
  %v183 = vld [vmem:[%s1 + $0xf0] sm:$0xf]
  %v184 = vld [vmem:[%s1 + $0xf4] sm:$0xf]
  %v185 = vld [vmem:[%s1 + $0xf8] sm:$0x7]
  %v186 = vld [vmem:[%s2] sm:$0x1]
  %v188 = vperm.slane %v186, 0
  %v253 = vunpack.c.l.b16 %v123
  %v254 = vunpack.c.l.b16 %v124
  %v255 = vunpack.c.l.b16 %v125
  %v256 = vunpack.c.l.b16 %v126
  %v257 = vunpack.c.l.b16 %v127
  %v258 = vunpack.c.l.b16 %v128
  %v259 = vunpack.c.l.b16 %v129
  %v260 = vunpack.c.l.b16 %v130
  %v261 = vunpack.c.l.b16 %v131
  %v262 = vunpack.c.l.b16 %v132
  %v263 = vunpack.c.l.b16 %v133
  %v264 = vunpack.c.l.b16 %v134
  %v265 = vunpack.c.l.b16 %v135
  %v266 = vunpack.c.l.b16 %v136
  %v267 = vunpack.c.l.b16 %v137
  %v268 = vunpack.c.l.b16 %v138
  %v269 = vunpack.c.l.b16 %v139
  %v270 = vunpack.c.l.b16 %v140
  %v271 = vunpack.c.l.b16 %v141
  %v272 = vunpack.c.l.b16 %v142
  %v273 = vunpack.c.l.b16 %v143
  %v274 = vunpack.c.l.b16 %v144
  %v275 = vunpack.c.l.b16 %v145
  %v276 = vunpack.c.l.b16 %v146
  %v277 = vunpack.c.l.b16 %v147
  %v278 = vunpack.c.l.b16 %v148
  %v279 = vunpack.c.l.b16 %v149
  %v280 = vunpack.c.l.b16 %v150
  %v281 = vunpack.c.l.b16 %v151
  %v282 = vunpack.c.l.b16 %v152
  %v283 = vunpack.c.l.b16 %v153
  %v284 = vunpack.c.l.b16 %v154
  %v285 = vunpack.c.l.b16 %v155
  %v286 = vunpack.c.l.b16 %v156
  %v287 = vunpack.c.l.b16 %v157
  %v288 = vunpack.c.l.b16 %v158
  %v289 = vunpack.c.l.b16 %v159
  %v290 = vunpack.c.l.b16 %v160
  %v291 = vunpack.c.l.b16 %v161
  %v292 = vunpack.c.l.b16 %v162
  %v293 = vunpack.c.l.b16 %v163
  %v294 = vunpack.c.l.b16 %v164
  %v295 = vunpack.c.l.b16 %v165
  %v296 = vunpack.c.l.b16 %v166
  %v297 = vunpack.c.l.b16 %v167
  %v298 = vunpack.c.l.b16 %v168
  %v299 = vunpack.c.l.b16 %v169
  %v300 = vunpack.c.l.b16 %v170
  %v301 = vunpack.c.l.b16 %v171
  %v302 = vunpack.c.l.b16 %v172
  %v303 = vunpack.c.l.b16 %v173
  %v304 = vunpack.c.l.b16 %v174
  %v305 = vunpack.c.l.b16 %v175
  %v306 = vunpack.c.l.b16 %v176
  %v307 = vunpack.c.l.b16 %v177
  %v308 = vunpack.c.l.b16 %v178
  %v309 = vunpack.c.l.b16 %v179
  %v310 = vunpack.c.l.b16 %v180
  %v311 = vunpack.c.l.b16 %v181
  %v312 = vunpack.c.l.b16 %v182
  %v313 = vunpack.c.l.b16 %v183
  %v314 = vunpack.c.l.b16 %v184
  %v315 = vunpack.c.l.b16 %v185
  %v316 = vpack.c.b16 %v254, %v253
  %v317 = vpack.c.b16 %v256, %v255
  %v318 = vpack.c.b16 %v258, %v257
  %v319 = vpack.c.b16 %v260, %v259
  %v320 = vpack.c.b16 %v262, %v261
  %v321 = vpack.c.b16 %v264, %v263
  %v322 = vpack.c.b16 %v266, %v265
  %v323 = vpack.c.b16 %v268, %v267
  %v324 = vpack.c.b16 %v270, %v269
  %v325 = vpack.c.b16 %v272, %v271
  %v326 = vpack.c.b16 %v274, %v273
  %v327 = vpack.c.b16 %v276, %v275
  %v328 = vpack.c.b16 %v278, %v277
  %v329 = vpack.c.b16 %v280, %v279
  %v330 = vpack.c.b16 %v282, %v281
  %v331 = vpack.c.b16 %v284, %v283
  %v332 = vpack.c.b16 %v286, %v285
  %v333 = vpack.c.b16 %v288, %v287
  %v334 = vpack.c.b16 %v290, %v289
  %v335 = vpack.c.b16 %v292, %v291
  %v336 = vpack.c.b16 %v294, %v293
  %v337 = vpack.c.b16 %v296, %v295
  %v338 = vpack.c.b16 %v298, %v297
  %v339 = vpack.c.b16 %v300, %v299
  %v340 = vpack.c.b16 %v302, %v301
  %v341 = vpack.c.b16 %v304, %v303
  %v342 = vpack.c.b16 %v306, %v305
  %v343 = vpack.c.b16 %v308, %v307
  %v344 = vpack.c.b16 %v310, %v309
  %v345 = vpack.c.b16 %v312, %v311
  %v346 = vpack.c.b16 %v314, %v313
  %v347 = vpack.c.b16 %v315, %v315
  %vm379 = vcmask 957440
  %v381 = vsel %vm379, %v94, 0
  %v384 = vsel %vm379, %v98, 0
  %v387 = vsel %vm379, %v102, 0
  %v390 = vsel %vm379, %v106, 0
  %v393 = vsel %vm379, %v110, 0
  %v396 = vsel %vm379, %v114, 0
  %v399 = vsel %vm379, %v118, 0
  %v402 = vsel %vm379, %v122, 0
  %vm404 = vcmask 1041408
  %vm405 = vcmask 1042432
  %v406 = vsel %vm404, 4294967295, 65535
  %v407 = vsel %vm405, %v406, 0
  %v409 = vand.u32 %v347, %v407
  %411 = vmatpush.bf16.msra.mxu0 %v323
  %412 = vmatpush.bf16.msra.mxu0 %v322
  %413 = vmatpush.bf16.msra.mxu0 %v321
  %414 = vmatpush.bf16.msra.mxu0 %v320
  %415 = vmatpush.bf16.msra.mxu0 %v319
  %416 = vmatpush.bf16.msra.mxu0 %v318
  %417 = vmatpush.bf16.msra.mxu0 %v317
  %418 = vmatpush.bf16.msra.mxu0 %v316
  %419 = vmatmul.bf16.gmra.mxu0 %v91
  %v420 = vpop.f32.mrf.mxu0
  %v421 = vadd.f32 %v188, %v420
  %v422 = vpop.f32.mrf.mxu0
  %v423 = vadd.f32 %v188, %v422
  %424 = vmatmul.bf16.gmra.mxu0 %v95
  %v425 = vpop.f32.mrf.mxu0
  %v426 = vadd.f32 %v188, %v425
  %v427 = vpop.f32.mrf.mxu0
  %v428 = vadd.f32 %v188, %v427
  %429 = vmatmul.bf16.gmra.mxu0 %v99
  %v430 = vpop.f32.mrf.mxu0
  %v431 = vadd.f32 %v188, %v430
  %v432 = vpop.f32.mrf.mxu0
  %v433 = vadd.f32 %v188, %v432
  %434 = vmatmul.bf16.gmra.mxu0 %v103
  %v435 = vpop.f32.mrf.mxu0
  %v436 = vadd.f32 %v188, %v435
  %v437 = vpop.f32.mrf.mxu0
  %v438 = vadd.f32 %v188, %v437
  %439 = vmatmul.bf16.gmra.mxu0 %v107
  %v440 = vpop.f32.mrf.mxu0
  %v441 = vadd.f32 %v188, %v440
  %v442 = vpop.f32.mrf.mxu0
  %v443 = vadd.f32 %v188, %v442
  %444 = vmatmul.bf16.gmra.mxu0 %v111
  %v445 = vpop.f32.mrf.mxu0
  %v446 = vadd.f32 %v188, %v445
  %v447 = vpop.f32.mrf.mxu0
  %v448 = vadd.f32 %v188, %v447
  %449 = vmatmul.bf16.gmra.mxu0 %v115
  %v450 = vpop.f32.mrf.mxu0
  %v451 = vadd.f32 %v188, %v450
  %v452 = vpop.f32.mrf.mxu0
  %v453 = vadd.f32 %v188, %v452
  %454 = vmatmul.bf16.gmra.mxu0 %v119
  %v455 = vpop.f32.mrf.mxu0
  %v456 = vadd.f32 %v188, %v455
  %v457 = vpop.f32.mrf.mxu0
  %v458 = vadd.f32 %v188, %v457
  %459 = vdwg.mxu0
  %460 = vmatpush.bf16.msra.mxu0 %v331
  %461 = vmatpush.bf16.msra.mxu0 %v330
  %462 = vmatpush.bf16.msra.mxu0 %v329
  %463 = vmatpush.bf16.msra.mxu0 %v328
  %464 = vmatpush.bf16.msra.mxu0 %v327
  %465 = vmatpush.bf16.msra.mxu0 %v326
  %466 = vmatpush.bf16.msra.mxu0 %v325
  %467 = vmatpush.bf16.msra.mxu0 %v324
  %468 = vmatmul.bf16.gmra.mxu0 %v92
  %v469 = vpop.f32.mrf.mxu0
  %v470 = vadd.f32 %v421, %v469
  %v471 = vpop.f32.mrf.mxu0
  %v472 = vadd.f32 %v423, %v471
  %473 = vmatmul.bf16.gmra.mxu0 %v96
  %v474 = vpop.f32.mrf.mxu0
  %v475 = vadd.f32 %v426, %v474
  %v476 = vpop.f32.mrf.mxu0
  %v477 = vadd.f32 %v428, %v476
  %478 = vmatmul.bf16.gmra.mxu0 %v100
  %v479 = vpop.f32.mrf.mxu0
  %v480 = vadd.f32 %v431, %v479
  %v481 = vpop.f32.mrf.mxu0
  %v482 = vadd.f32 %v433, %v481
  %483 = vmatmul.bf16.gmra.mxu0 %v104
  %v484 = vpop.f32.mrf.mxu0
  %v485 = vadd.f32 %v436, %v484
  %v486 = vpop.f32.mrf.mxu0
  %v487 = vadd.f32 %v438, %v486
  %488 = vmatmul.bf16.gmra.mxu0 %v108
  %v489 = vpop.f32.mrf.mxu0
  %v490 = vadd.f32 %v441, %v489
  %v491 = vpop.f32.mrf.mxu0
  %v492 = vadd.f32 %v443, %v491
  %493 = vmatmul.bf16.gmra.mxu0 %v112
  %v494 = vpop.f32.mrf.mxu0
  %v495 = vadd.f32 %v446, %v494
  %v496 = vpop.f32.mrf.mxu0
  %v497 = vadd.f32 %v448, %v496
  %498 = vmatmul.bf16.gmra.mxu0 %v116
  %v499 = vpop.f32.mrf.mxu0
  %v500 = vadd.f32 %v451, %v499
  %v501 = vpop.f32.mrf.mxu0
  %v502 = vadd.f32 %v453, %v501
  %503 = vmatmul.bf16.gmra.mxu0 %v120
  %v504 = vpop.f32.mrf.mxu0
  %v505 = vadd.f32 %v456, %v504
  %v506 = vpop.f32.mrf.mxu0
  %v507 = vadd.f32 %v458, %v506
  %508 = vdwg.mxu0
  %509 = vmatpush.bf16.msra.mxu0 %v339
  %510 = vmatpush.bf16.msra.mxu0 %v338
  %511 = vmatpush.bf16.msra.mxu0 %v337
  %512 = vmatpush.bf16.msra.mxu0 %v336
  %513 = vmatpush.bf16.msra.mxu0 %v335
  %514 = vmatpush.bf16.msra.mxu0 %v334
  %515 = vmatpush.bf16.msra.mxu0 %v333
  %516 = vmatpush.bf16.msra.mxu0 %v332
  %517 = vmatmul.bf16.gmra.mxu0 %v93
  %v518 = vpop.f32.mrf.mxu0
  %v519 = vadd.f32 %v470, %v518
  %v520 = vpop.f32.mrf.mxu0
  %v521 = vadd.f32 %v472, %v520
  %522 = vmatmul.bf16.gmra.mxu0 %v97
  %v523 = vpop.f32.mrf.mxu0
  %v524 = vadd.f32 %v475, %v523
  %v525 = vpop.f32.mrf.mxu0
  %v526 = vadd.f32 %v477, %v525
  %527 = vmatmul.bf16.gmra.mxu0 %v101
  %v528 = vpop.f32.mrf.mxu0
  %v529 = vadd.f32 %v480, %v528
  %v530 = vpop.f32.mrf.mxu0
  %v531 = vadd.f32 %v482, %v530
  %532 = vmatmul.bf16.gmra.mxu0 %v105
  %v533 = vpop.f32.mrf.mxu0
  %v534 = vadd.f32 %v485, %v533
  %v535 = vpop.f32.mrf.mxu0
  %v536 = vadd.f32 %v487, %v535
  %537 = vmatmul.bf16.gmra.mxu0 %v109
  %v538 = vpop.f32.mrf.mxu0
  %v539 = vadd.f32 %v490, %v538
  %v540 = vpop.f32.mrf.mxu0
  %v541 = vadd.f32 %v492, %v540
  %542 = vmatmul.bf16.gmra.mxu0 %v113
  %v543 = vpop.f32.mrf.mxu0
  %v544 = vadd.f32 %v495, %v543
  %v545 = vpop.f32.mrf.mxu0
  %v546 = vadd.f32 %v497, %v545
  %547 = vmatmul.bf16.gmra.mxu0 %v117
  %v548 = vpop.f32.mrf.mxu0
  %v549 = vadd.f32 %v500, %v548
  %v550 = vpop.f32.mrf.mxu0
  %v551 = vadd.f32 %v502, %v550
  %552 = vmatmul.bf16.gmra.mxu0 %v121
  %v553 = vpop.f32.mrf.mxu0
  %v554 = vadd.f32 %v505, %v553
  %v555 = vpop.f32.mrf.mxu0
  %v556 = vadd.f32 %v507, %v555
  %557 = vdwg.mxu0
  %558 = vmatpush.bf16.msra.mxu0 %v409
  %559 = vmatpush.bf16.msra.mxu0 %v346
  %560 = vmatpush.bf16.msra.mxu0 %v345
  %561 = vmatpush.bf16.msra.mxu0 %v344
  %562 = vmatpush.bf16.msra.mxu0 %v343
  %563 = vmatpush.bf16.msra.mxu0 %v342
  %564 = vmatpush.bf16.msra.mxu0 %v341
  %565 = vmatpush.bf16.msra.mxu0 %v340
  %566 = vmatmul.bf16.gmra.mxu0 %v381
  %v567 = vpop.f32.mrf.mxu0
  %v568 = vadd.f32 %v519, %v567
  %v569 = vpop.f32.mrf.mxu0
  %v570 = vadd.f32 %v521, %v569
  %571 = vmatmul.bf16.gmra.mxu0 %v384
  %v572 = vpop.f32.mrf.mxu0
  %v573 = vadd.f32 %v524, %v572
  %v574 = vpop.f32.mrf.mxu0
  %v575 = vadd.f32 %v526, %v574
  %576 = vmatmul.bf16.gmra.mxu0 %v387
  %v577 = vpop.f32.mrf.mxu0
  %v578 = vadd.f32 %v529, %v577
  %v579 = vpop.f32.mrf.mxu0
  %v580 = vadd.f32 %v531, %v579
  %581 = vmatmul.bf16.gmra.mxu0 %v390
  %v582 = vpop.f32.mrf.mxu0
  %v583 = vadd.f32 %v534, %v582
  %v584 = vpop.f32.mrf.mxu0
  %v585 = vadd.f32 %v536, %v584
  %586 = vmatmul.bf16.gmra.mxu0 %v393
  %v587 = vpop.f32.mrf.mxu0
  %v588 = vadd.f32 %v539, %v587
  %v589 = vpop.f32.mrf.mxu0
  %v590 = vadd.f32 %v541, %v589
  %591 = vmatmul.bf16.gmra.mxu0 %v396
  %v592 = vpop.f32.mrf.mxu0
  %v593 = vadd.f32 %v544, %v592
  %v594 = vpop.f32.mrf.mxu0
  %v595 = vadd.f32 %v546, %v594
  %596 = vmatmul.bf16.gmra.mxu0 %v399
  %v597 = vpop.f32.mrf.mxu0
  %v598 = vadd.f32 %v549, %v597
  %v599 = vpop.f32.mrf.mxu0
  %v600 = vadd.f32 %v551, %v599
  %601 = vmatmul.bf16.gmra.mxu0 %v402
  %v602 = vpop.f32.mrf.mxu0
  %v603 = vadd.f32 %v554, %v602
  %v604 = vpop.f32.mrf.mxu0
  %v605 = vadd.f32 %v556, %v604
  %606 = vdwg.mxu0
  %vm607 = vcmp.gt.f32.partialorder %v568, 0.0
  %vm608 = vcmp.gt.f32.partialorder %v570, 0.0
  %vm609 = vcmp.gt.f32.partialorder %v573, 0.0
  %vm610 = vcmp.gt.f32.partialorder %v575, 0.0
  %vm611 = vcmp.gt.f32.partialorder %v578, 0.0
  %vm612 = vcmp.gt.f32.partialorder %v580, 0.0
  %vm613 = vcmp.gt.f32.partialorder %v583, 0.0
  %vm614 = vcmp.gt.f32.partialorder %v585, 0.0
  %vm615 = vcmp.gt.f32.partialorder %v588, 0.0
  %vm616 = vcmp.gt.f32.partialorder %v590, 0.0
  %vm617 = vcmp.gt.f32.partialorder %v593, 0.0
  %vm618 = vcmp.gt.f32.partialorder %v595, 0.0
  %vm619 = vcmp.gt.f32.partialorder %v598, 0.0
  %vm620 = vcmp.gt.f32.partialorder %v600, 0.0
  %vm621 = vcmp.gt.f32.partialorder %v603, 0.0
  %vm622 = vcmp.gt.f32.partialorder %v605, 0.0
  %v623 = vmul.f32 %v568, 0.2
  %v624 = vmul.f32 %v570, 0.2
  %v625 = vmul.f32 %v573, 0.2
  %v626 = vmul.f32 %v575, 0.2
  %v627 = vmul.f32 %v578, 0.2
  %v628 = vmul.f32 %v580, 0.2
  %v629 = vmul.f32 %v583, 0.2
  %v630 = vmul.f32 %v585, 0.2
  %v631 = vmul.f32 %v588, 0.2
  %v632 = vmul.f32 %v590, 0.2
  %v633 = vmul.f32 %v593, 0.2
  %v634 = vmul.f32 %v595, 0.2
  %v635 = vmul.f32 %v598, 0.2
  %v636 = vmul.f32 %v600, 0.2
  %v637 = vmul.f32 %v603, 0.2
  %v638 = vmul.f32 %v605, 0.2
  %v639 = vsel %vm607, %v568, %v623
  %v640 = vsel %vm608, %v570, %v624
  %v641 = vsel %vm609, %v573, %v625
  %v642 = vsel %vm610, %v575, %v626
  %v643 = vsel %vm611, %v578, %v627
  %v644 = vsel %vm612, %v580, %v628
  %v645 = vsel %vm613, %v583, %v629
  %v646 = vsel %vm614, %v585, %v630
  %v647 = vsel %vm615, %v588, %v631
  %v648 = vsel %vm616, %v590, %v632
  %v649 = vsel %vm617, %v593, %v633
  %v650 = vsel %vm618, %v595, %v634
  %v651 = vsel %vm619, %v598, %v635
  %v652 = vsel %vm620, %v600, %v636
  %v653 = vsel %vm621, %v603, %v637
  %v654 = vsel %vm622, %v605, %v638
  %v655 = vld [vmem:[%s3] sm:$0xff]
  %v656 = vld [vmem:[%s3 + $0x8] sm:$0xff]
  %v657 = vld [vmem:[%s3 + $0x10] sm:$0xff]
  %v658 = vld [vmem:[%s3 + $0x18] sm:$0xff]
  %v659 = vld [vmem:[%s3 + $0x20] sm:$0xff]
  %v660 = vld [vmem:[%s3 + $0x28] sm:$0xff]
  %v661 = vld [vmem:[%s3 + $0x30] sm:$0xff]
  %v662 = vld [vmem:[%s3 + $0x38] sm:$0xff]
  %v663 = vld [vmem:[%s4] sm:$0x1]
  %v665 = vperm.slane %v663, 0
  %vm667 = vcmask 523264
  %v669 = vsel %vm667, %v639, 0
  %v672 = vsel %vm667, %v640, 0
  %v675 = vsel %vm667, %v641, 0
  %v678 = vsel %vm667, %v642, 0
  %v681 = vsel %vm667, %v643, 0
  %v684 = vsel %vm667, %v644, 0
  %v687 = vsel %vm667, %v645, 0
  %v690 = vsel %vm667, %v646, 0
  %v693 = vsel %vm667, %v647, 0
  %v696 = vsel %vm667, %v648, 0
  %v699 = vsel %vm667, %v649, 0
  %v702 = vsel %vm667, %v650, 0
  %v705 = vsel %vm667, %v651, 0
  %v708 = vsel %vm667, %v652, 0
  %v711 = vsel %vm667, %v653, 0
  %v714 = vsel %vm667, %v654, 0
  %716 = vmatpush.msra.mxu0 0.0
  %717 = vmatpush.msra.mxu0 0.0
  %718 = vmatpush.msra.mxu0 0.0
  %719 = vmatpush.msra.mxu0 0.0
  %720 = vmatpush.msra.mxu0 0.0
  %721 = vmatpush.msra.mxu0 0.0
  %722 = vmatpush.msra.mxu0 0.0
  %723 = vmatpush.msra.mxu0 0.0
  %724 = vmatpush.msra.mxu0 %v662
  %725 = vmatpush.msra.mxu0 %v661
  %726 = vmatpush.msra.mxu0 %v660
  %727 = vmatpush.msra.mxu0 %v659
  %728 = vmatpush.msra.mxu0 %v658
  %729 = vmatpush.msra.mxu0 %v657
  %730 = vmatpush.msra.mxu0 %v656
  %731 = vmatpush.msra.mxu0 %v655
  %732 = vmatmul.f32.gmra.mxu0 %v669
  %v733 = vpop.f32.mrf.mxu0
  %v734 = vadd.f32 %v665, %v733
  %735 = vmatmul.f32.gmra.mxu0 %v672
  %v736 = vpop.f32.mrf.mxu0
  %v737 = vadd.f32 %v665, %v736
  %738 = vmatmul.f32.gmra.mxu0 %v675
  %v739 = vpop.f32.mrf.mxu0
  %v740 = vadd.f32 %v665, %v739
  %741 = vmatmul.f32.gmra.mxu0 %v678
  %v742 = vpop.f32.mrf.mxu0
  %v743 = vadd.f32 %v665, %v742
  %744 = vmatmul.f32.gmra.mxu0 %v681
  %v745 = vpop.f32.mrf.mxu0
  %v746 = vadd.f32 %v665, %v745
  %747 = vmatmul.f32.gmra.mxu0 %v684
  %v748 = vpop.f32.mrf.mxu0
  %v749 = vadd.f32 %v665, %v748
  %750 = vmatmul.f32.gmra.mxu0 %v687
  %v751 = vpop.f32.mrf.mxu0
  %v752 = vadd.f32 %v665, %v751
  %753 = vmatmul.f32.gmra.mxu0 %v690
  %v754 = vpop.f32.mrf.mxu0
  %v755 = vadd.f32 %v665, %v754
  %756 = vmatmul.f32.gmra.mxu0 %v693
  %v757 = vpop.f32.mrf.mxu0
  %v758 = vadd.f32 %v665, %v757
  %759 = vmatmul.f32.gmra.mxu0 %v696
  %v760 = vpop.f32.mrf.mxu0
  %v761 = vadd.f32 %v665, %v760
  %762 = vmatmul.f32.gmra.mxu0 %v699
  %v763 = vpop.f32.mrf.mxu0
  %v764 = vadd.f32 %v665, %v763
  %765 = vmatmul.f32.gmra.mxu0 %v702
  %v766 = vpop.f32.mrf.mxu0
  %v767 = vadd.f32 %v665, %v766
  %768 = vmatmul.f32.gmra.mxu0 %v705
  %v769 = vpop.f32.mrf.mxu0
  %v770 = vadd.f32 %v665, %v769
  %771 = vmatmul.f32.gmra.mxu0 %v708
  %v772 = vpop.f32.mrf.mxu0
  %v773 = vadd.f32 %v665, %v772
  %774 = vmatmul.f32.gmra.mxu0 %v711
  %v775 = vpop.f32.mrf.mxu0
  %v776 = vadd.f32 %v665, %v775
  %777 = vmatmul.f32.gmra.mxu0 %v714
  %v778 = vpop.f32.mrf.mxu0
  %v779 = vadd.f32 %v665, %v778
  %780 = vdwg.mxu0
  %vm781 = vcmp.gt.f32.partialorder %v734, 0.0
  %vm782 = vcmp.gt.f32.partialorder %v737, 0.0
  %vm783 = vcmp.gt.f32.partialorder %v740, 0.0
  %vm784 = vcmp.gt.f32.partialorder %v743, 0.0
  %vm785 = vcmp.gt.f32.partialorder %v746, 0.0
  %vm786 = vcmp.gt.f32.partialorder %v749, 0.0
  %vm787 = vcmp.gt.f32.partialorder %v752, 0.0
  %vm788 = vcmp.gt.f32.partialorder %v755, 0.0
  %vm789 = vcmp.gt.f32.partialorder %v758, 0.0
  %vm790 = vcmp.gt.f32.partialorder %v761, 0.0
  %vm791 = vcmp.gt.f32.partialorder %v764, 0.0
  %vm792 = vcmp.gt.f32.partialorder %v767, 0.0
  %vm793 = vcmp.gt.f32.partialorder %v770, 0.0
  %vm794 = vcmp.gt.f32.partialorder %v773, 0.0
  %vm795 = vcmp.gt.f32.partialorder %v776, 0.0
  %vm796 = vcmp.gt.f32.partialorder %v779, 0.0
  %v797 = vmul.f32 %v734, 0.2
  %v798 = vmul.f32 %v737, 0.2
  %v799 = vmul.f32 %v740, 0.2
  %v800 = vmul.f32 %v743, 0.2
  %v801 = vmul.f32 %v746, 0.2
  %v802 = vmul.f32 %v749, 0.2
  %v803 = vmul.f32 %v752, 0.2
  %v804 = vmul.f32 %v755, 0.2
  %v805 = vmul.f32 %v758, 0.2
  %v806 = vmul.f32 %v761, 0.2
  %v807 = vmul.f32 %v764, 0.2
  %v808 = vmul.f32 %v767, 0.2
  %v809 = vmul.f32 %v770, 0.2
  %v810 = vmul.f32 %v773, 0.2
  %v811 = vmul.f32 %v776, 0.2
  %v812 = vmul.f32 %v779, 0.2
  %v813 = vsel %vm781, %v734, %v797
  %v814 = vsel %vm782, %v737, %v798
  %v815 = vsel %vm783, %v740, %v799
  %v816 = vsel %vm784, %v743, %v800
  %v817 = vsel %vm785, %v746, %v801
  %v818 = vsel %vm786, %v749, %v802
  %v819 = vsel %vm787, %v752, %v803
  %v820 = vsel %vm788, %v755, %v804
  %v821 = vsel %vm789, %v758, %v805
  %v822 = vsel %vm790, %v761, %v806
  %v823 = vsel %vm791, %v764, %v807
  %v824 = vsel %vm792, %v767, %v808
  %v825 = vsel %vm793, %v770, %v809
  %v826 = vsel %vm794, %v773, %v810
  %v827 = vsel %vm795, %v776, %v811
  %v828 = vsel %vm796, %v779, %v812
  %v829 = vld [vmem:[%s5] sm:$0xff]
  %v830 = vld [vmem:[%s5 + $0x8] sm:$0xff]
  %v831 = vld [vmem:[%s5 + $0x10] sm:$0xff]
  %v832 = vld [vmem:[%s5 + $0x18] sm:$0xff]
  %s833 = sld [smem:[#allocation2]]
  %v834 = vstv %s833
  %vm835 = vcmask 261120
  %v837 = vsel %vm835, %v813, 0
  %v840 = vsel %vm835, %v814, 0
  %v843 = vsel %vm835, %v815, 0
  %v846 = vsel %vm835, %v816, 0
  %v849 = vsel %vm835, %v817, 0
  %v852 = vsel %vm835, %v818, 0
  %v855 = vsel %vm835, %v819, 0
  %v858 = vsel %vm835, %v820, 0
  %v861 = vsel %vm835, %v821, 0
  %v864 = vsel %vm835, %v822, 0
  %v867 = vsel %vm835, %v823, 0
  %v870 = vsel %vm835, %v824, 0
  %v873 = vsel %vm835, %v825, 0
  %v876 = vsel %vm835, %v826, 0
  %v879 = vsel %vm835, %v827, 0
  %v882 = vsel %vm835, %v828, 0
  %884 = vmatpush.msra.mxu0 0.0
  %885 = vmatpush.msra.mxu0 0.0
  %886 = vmatpush.msra.mxu0 0.0
  %887 = vmatpush.msra.mxu0 0.0
  %888 = vmatpush.msra.mxu0 0.0
  %889 = vmatpush.msra.mxu0 0.0
  %890 = vmatpush.msra.mxu0 0.0
  %891 = vmatpush.msra.mxu0 0.0
  %892 = vmatpush.msra.mxu0 0.0
  %893 = vmatpush.msra.mxu0 0.0
  %894 = vmatpush.msra.mxu0 0.0
  %895 = vmatpush.msra.mxu0 0.0
  %896 = vmatpush.msra.mxu0 %v832
  %897 = vmatpush.msra.mxu0 %v831
  %898 = vmatpush.msra.mxu0 %v830
  %899 = vmatpush.msra.mxu0 %v829
  %900 = vmatmul.f32.gmra.mxu0 %v837
  %v901 = vpop.f32.mrf.mxu0
  %v902 = vadd.f32 %v834, %v901
  %903 = vmatmul.f32.gmra.mxu0 %v840
  %v904 = vpop.f32.mrf.mxu0
  %v905 = vadd.f32 %v834, %v904
  %906 = vmatmul.f32.gmra.mxu0 %v843
  %v907 = vpop.f32.mrf.mxu0
  %v908 = vadd.f32 %v834, %v907
  %909 = vmatmul.f32.gmra.mxu0 %v846
  %v910 = vpop.f32.mrf.mxu0
  %v911 = vadd.f32 %v834, %v910
  %912 = vmatmul.f32.gmra.mxu0 %v849
  %v913 = vpop.f32.mrf.mxu0
  %v914 = vadd.f32 %v834, %v913
  %915 = vmatmul.f32.gmra.mxu0 %v852
  %v916 = vpop.f32.mrf.mxu0
  %v917 = vadd.f32 %v834, %v916
  %918 = vmatmul.f32.gmra.mxu0 %v855
  %v919 = vpop.f32.mrf.mxu0
  %v920 = vadd.f32 %v834, %v919
  %921 = vmatmul.f32.gmra.mxu0 %v858
  %v922 = vpop.f32.mrf.mxu0
  %v923 = vadd.f32 %v834, %v922
  %924 = vmatmul.f32.gmra.mxu0 %v861
  %v925 = vpop.f32.mrf.mxu0
  %v926 = vadd.f32 %v834, %v925
  %927 = vmatmul.f32.gmra.mxu0 %v864
  %v928 = vpop.f32.mrf.mxu0
  %v929 = vadd.f32 %v834, %v928
  %930 = vmatmul.f32.gmra.mxu0 %v867
  %v931 = vpop.f32.mrf.mxu0
  %v932 = vadd.f32 %v834, %v931
  %933 = vmatmul.f32.gmra.mxu0 %v870
  %v934 = vpop.f32.mrf.mxu0
  %v935 = vadd.f32 %v834, %v934
  %936 = vmatmul.f32.gmra.mxu0 %v873
  %v937 = vpop.f32.mrf.mxu0
  %v938 = vadd.f32 %v834, %v937
  %939 = vmatmul.f32.gmra.mxu0 %v876
  %v940 = vpop.f32.mrf.mxu0
  %v941 = vadd.f32 %v834, %v940
  %942 = vmatmul.f32.gmra.mxu0 %v879
  %v943 = vpop.f32.mrf.mxu0
  %v944 = vadd.f32 %v834, %v943
  %945 = vmatmul.f32.gmra.mxu0 %v882
  %v946 = vpop.f32.mrf.mxu0
  %v947 = vadd.f32 %v834, %v946
  %948 = vdwg.mxu0
  %v949 = vxor.u32 %v902, 2147483648
  %v950 = vxor.u32 %v905, 2147483648
  %v951 = vxor.u32 %v908, 2147483648
  %v952 = vxor.u32 %v911, 2147483648
  %v953 = vxor.u32 %v914, 2147483648
  %v954 = vxor.u32 %v917, 2147483648
  %v955 = vxor.u32 %v920, 2147483648
  %v956 = vxor.u32 %v923, 2147483648
  %v957 = vxor.u32 %v926, 2147483648
  %v958 = vxor.u32 %v929, 2147483648
  %v959 = vxor.u32 %v932, 2147483648
  %v960 = vxor.u32 %v935, 2147483648
  %v961 = vxor.u32 %v938, 2147483648
  %v962 = vxor.u32 %v941, 2147483648
  %v963 = vxor.u32 %v944, 2147483648
  %v964 = vxor.u32 %v947, 2147483648
  %v965 = vmul.f32 %v949, 1.442695
  %v966 = vpow.pop %v965
  %v967 = vmul.f32 %v950, 1.442695
  %v968 = vpow.pop %v967
  %v969 = vmul.f32 %v951, 1.442695
  %v970 = vpow.pop %v969
  %v971 = vmul.f32 %v952, 1.442695
  %v972 = vpow.pop %v971
  %v973 = vmul.f32 %v953, 1.442695
  %v974 = vpow.pop %v973
  %v975 = vmul.f32 %v954, 1.442695
  %v976 = vpow.pop %v975
  %v977 = vmul.f32 %v955, 1.442695
  %v978 = vpow.pop %v977
  %v979 = vmul.f32 %v956, 1.442695
  %v980 = vpow.pop %v979
  %v981 = vmul.f32 %v957, 1.442695
  %v982 = vpow.pop %v981
  %v983 = vmul.f32 %v958, 1.442695
  %v984 = vpow.pop %v983
  %v985 = vmul.f32 %v959, 1.442695
  %v986 = vpow.pop %v985
  %v987 = vmul.f32 %v960, 1.442695
  %v988 = vpow.pop %v987
  %v989 = vmul.f32 %v961, 1.442695
  %v990 = vpow.pop %v989
  %v991 = vmul.f32 %v962, 1.442695
  %v992 = vpow.pop %v991
  %v993 = vmul.f32 %v963, 1.442695
  %v994 = vpow.pop %v993
  %v995 = vmul.f32 %v964, 1.442695
  %v996 = vpow.pop %v995
  %v997 = vadd.f32 %v966, 1.0
  %v998 = vadd.f32 %v968, 1.0
  %v999 = vadd.f32 %v970, 1.0
  %v1000 = vadd.f32 %v972, 1.0
  %v1001 = vadd.f32 %v974, 1.0
  %v1002 = vadd.f32 %v976, 1.0
  %v1003 = vadd.f32 %v978, 1.0
  %v1004 = vadd.f32 %v980, 1.0
  %v1005 = vadd.f32 %v982, 1.0
  %v1006 = vadd.f32 %v984, 1.0
  %v1007 = vadd.f32 %v986, 1.0
  %v1008 = vadd.f32 %v988, 1.0
  %v1009 = vadd.f32 %v990, 1.0
  %v1010 = vadd.f32 %v992, 1.0
  %v1011 = vadd.f32 %v994, 1.0
  %v1012 = vadd.f32 %v996, 1.0
  %v1013 = vrcp.pop %v997
  %v1014 = vmul.f32 %v997, %v1013
  %v1015 = vsub.f32 1.0, %v1014
  %v1016 = vmul.f32 %v1013, %v1015
  %v1017 = vadd.f32 %v1013, %v1016
  %vm1018 = vweird.f32 %v997
  %vm1019 = vweird.f32 %v1013
  %vm1020 = vmor %vm1018, %vm1019
  %v1021 = vsel %vm1020, %v1013, %v1017
  %v1022 = vand.u32 2147483647, %v997
  %vm1023 = vcmp.eq.f32.partialorder %v1022, 8.507059e+37
  %v1024 = vand.u32 %v997, 2147483648
  %v1025 = vor.u32 1.1754944e-38, %v1024
  %v1026 = vsel %vm1023, %v1025, %v1021
  %v1027 = vmul.f32 1.0, %v1026
  %v1028 = vrcp.pop %v998
  %v1029 = vmul.f32 %v998, %v1028
  %v1030 = vsub.f32 1.0, %v1029
  %v1031 = vmul.f32 %v1028, %v1030
  %v1032 = vadd.f32 %v1028, %v1031
  %vm1033 = vweird.f32 %v998
  %vm1034 = vweird.f32 %v1028
  %vm1035 = vmor %vm1033, %vm1034
  %v1036 = vsel %vm1035, %v1028, %v1032
  %v1037 = vand.u32 2147483647, %v998
  %vm1038 = vcmp.eq.f32.partialorder %v1037, 8.507059e+37
  %v1039 = vand.u32 %v998, 2147483648
  %v1040 = vor.u32 1.1754944e-38, %v1039
  %v1041 = vsel %vm1038, %v1040, %v1036
  %v1042 = vmul.f32 1.0, %v1041
  %v1043 = vrcp.pop %v999
  %v1044 = vmul.f32 %v999, %v1043
  %v1045 = vsub.f32 1.0, %v1044
  %v1046 = vmul.f32 %v1043, %v1045
  %v1047 = vadd.f32 %v1043, %v1046
  %vm1048 = vweird.f32 %v999
  %vm1049 = vweird.f32 %v1043
  %vm1050 = vmor %vm1048, %vm1049
  %v1051 = vsel %vm1050, %v1043, %v1047
  %v1052 = vand.u32 2147483647, %v999
  %vm1053 = vcmp.eq.f32.partialorder %v1052, 8.507059e+37
  %v1054 = vand.u32 %v999, 2147483648
  %v1055 = vor.u32 1.1754944e-38, %v1054
  %v1056 = vsel %vm1053, %v1055, %v1051
  %v1057 = vmul.f32 1.0, %v1056
  %v1058 = vrcp.pop %v1000
  %v1059 = vmul.f32 %v1000, %v1058
  %v1060 = vsub.f32 1.0, %v1059
  %v1061 = vmul.f32 %v1058, %v1060
  %v1062 = vadd.f32 %v1058, %v1061
  %vm1063 = vweird.f32 %v1000
  %vm1064 = vweird.f32 %v1058
  %vm1065 = vmor %vm1063, %vm1064
  %v1066 = vsel %vm1065, %v1058, %v1062
  %v1067 = vand.u32 2147483647, %v1000
  %vm1068 = vcmp.eq.f32.partialorder %v1067, 8.507059e+37
  %v1069 = vand.u32 %v1000, 2147483648
  %v1070 = vor.u32 1.1754944e-38, %v1069
  %v1071 = vsel %vm1068, %v1070, %v1066
  %v1072 = vmul.f32 1.0, %v1071
  %v1073 = vrcp.pop %v1001
  %v1074 = vmul.f32 %v1001, %v1073
  %v1075 = vsub.f32 1.0, %v1074
  %v1076 = vmul.f32 %v1073, %v1075
  %v1077 = vadd.f32 %v1073, %v1076
  %vm1078 = vweird.f32 %v1001
  %vm1079 = vweird.f32 %v1073
  %vm1080 = vmor %vm1078, %vm1079
  %v1081 = vsel %vm1080, %v1073, %v1077
  %v1082 = vand.u32 2147483647, %v1001
  %vm1083 = vcmp.eq.f32.partialorder %v1082, 8.507059e+37
  %v1084 = vand.u32 %v1001, 2147483648
  %v1085 = vor.u32 1.1754944e-38, %v1084
  %v1086 = vsel %vm1083, %v1085, %v1081
  %v1087 = vmul.f32 1.0, %v1086
  %v1088 = vrcp.pop %v1002
  %v1089 = vmul.f32 %v1002, %v1088
  %v1090 = vsub.f32 1.0, %v1089
  %v1091 = vmul.f32 %v1088, %v1090
  %v1092 = vadd.f32 %v1088, %v1091
  %vm1093 = vweird.f32 %v1002
  %vm1094 = vweird.f32 %v1088
  %vm1095 = vmor %vm1093, %vm1094
  %v1096 = vsel %vm1095, %v1088, %v1092
  %v1097 = vand.u32 2147483647, %v1002
  %vm1098 = vcmp.eq.f32.partialorder %v1097, 8.507059e+37
  %v1099 = vand.u32 %v1002, 2147483648
  %v1100 = vor.u32 1.1754944e-38, %v1099
  %v1101 = vsel %vm1098, %v1100, %v1096
  %v1102 = vmul.f32 1.0, %v1101
  %v1103 = vrcp.pop %v1003
  %v1104 = vmul.f32 %v1003, %v1103
  %v1105 = vsub.f32 1.0, %v1104
  %v1106 = vmul.f32 %v1103, %v1105
  %v1107 = vadd.f32 %v1103, %v1106
  %vm1108 = vweird.f32 %v1003
  %vm1109 = vweird.f32 %v1103
  %vm1110 = vmor %vm1108, %vm1109
  %v1111 = vsel %vm1110, %v1103, %v1107
  %v1112 = vand.u32 2147483647, %v1003
  %vm1113 = vcmp.eq.f32.partialorder %v1112, 8.507059e+37
  %v1114 = vand.u32 %v1003, 2147483648
  %v1115 = vor.u32 1.1754944e-38, %v1114
  %v1116 = vsel %vm1113, %v1115, %v1111
  %v1117 = vmul.f32 1.0, %v1116
  %v1118 = vrcp.pop %v1004
  %v1119 = vmul.f32 %v1004, %v1118
  %v1120 = vsub.f32 1.0, %v1119
  %v1121 = vmul.f32 %v1118, %v1120
  %v1122 = vadd.f32 %v1118, %v1121
  %vm1123 = vweird.f32 %v1004
  %vm1124 = vweird.f32 %v1118
  %vm1125 = vmor %vm1123, %vm1124
  %v1126 = vsel %vm1125, %v1118, %v1122
  %v1127 = vand.u32 2147483647, %v1004
  %vm1128 = vcmp.eq.f32.partialorder %v1127, 8.507059e+37
  %v1129 = vand.u32 %v1004, 2147483648
  %v1130 = vor.u32 1.1754944e-38, %v1129
  %v1131 = vsel %vm1128, %v1130, %v1126
  %v1132 = vmul.f32 1.0, %v1131
  %v1133 = vrcp.pop %v1005
  %v1134 = vmul.f32 %v1005, %v1133
  %v1135 = vsub.f32 1.0, %v1134
  %v1136 = vmul.f32 %v1133, %v1135
  %v1137 = vadd.f32 %v1133, %v1136
  %vm1138 = vweird.f32 %v1005
  %vm1139 = vweird.f32 %v1133
  %vm1140 = vmor %vm1138, %vm1139
  %v1141 = vsel %vm1140, %v1133, %v1137
  %v1142 = vand.u32 2147483647, %v1005
  %vm1143 = vcmp.eq.f32.partialorder %v1142, 8.507059e+37
  %v1144 = vand.u32 %v1005, 2147483648
  %v1145 = vor.u32 1.1754944e-38, %v1144
  %v1146 = vsel %vm1143, %v1145, %v1141
  %v1147 = vmul.f32 1.0, %v1146
  %v1148 = vrcp.pop %v1006
  %v1149 = vmul.f32 %v1006, %v1148
  %v1150 = vsub.f32 1.0, %v1149
  %v1151 = vmul.f32 %v1148, %v1150
  %v1152 = vadd.f32 %v1148, %v1151
  %vm1153 = vweird.f32 %v1006
  %vm1154 = vweird.f32 %v1148
  %vm1155 = vmor %vm1153, %vm1154
  %v1156 = vsel %vm1155, %v1148, %v1152
  %v1157 = vand.u32 2147483647, %v1006
  %vm1158 = vcmp.eq.f32.partialorder %v1157, 8.507059e+37
  %v1159 = vand.u32 %v1006, 2147483648
  %v1160 = vor.u32 1.1754944e-38, %v1159
  %v1161 = vsel %vm1158, %v1160, %v1156
  %v1162 = vmul.f32 1.0, %v1161
  %v1163 = vrcp.pop %v1007
  %v1164 = vmul.f32 %v1007, %v1163
  %v1165 = vsub.f32 1.0, %v1164
  %v1166 = vmul.f32 %v1163, %v1165
  %v1167 = vadd.f32 %v1163, %v1166
  %vm1168 = vweird.f32 %v1007
  %vm1169 = vweird.f32 %v1163
  %vm1170 = vmor %vm1168, %vm1169
  %v1171 = vsel %vm1170, %v1163, %v1167
  %v1172 = vand.u32 2147483647, %v1007
  %vm1173 = vcmp.eq.f32.partialorder %v1172, 8.507059e+37
  %v1174 = vand.u32 %v1007, 2147483648
  %v1175 = vor.u32 1.1754944e-38, %v1174
  %v1176 = vsel %vm1173, %v1175, %v1171
  %v1177 = vmul.f32 1.0, %v1176
  %v1178 = vrcp.pop %v1008
  %v1179 = vmul.f32 %v1008, %v1178
  %v1180 = vsub.f32 1.0, %v1179
  %v1181 = vmul.f32 %v1178, %v1180
  %v1182 = vadd.f32 %v1178, %v1181
  %vm1183 = vweird.f32 %v1008
  %vm1184 = vweird.f32 %v1178
  %vm1185 = vmor %vm1183, %vm1184
  %v1186 = vsel %vm1185, %v1178, %v1182
  %v1187 = vand.u32 2147483647, %v1008
  %vm1188 = vcmp.eq.f32.partialorder %v1187, 8.507059e+37
  %v1189 = vand.u32 %v1008, 2147483648
  %v1190 = vor.u32 1.1754944e-38, %v1189
  %v1191 = vsel %vm1188, %v1190, %v1186
  %v1192 = vmul.f32 1.0, %v1191
  %v1193 = vrcp.pop %v1009
  %v1194 = vmul.f32 %v1009, %v1193
  %v1195 = vsub.f32 1.0, %v1194
  %v1196 = vmul.f32 %v1193, %v1195
  %v1197 = vadd.f32 %v1193, %v1196
  %vm1198 = vweird.f32 %v1009
  %vm1199 = vweird.f32 %v1193
  %vm1200 = vmor %vm1198, %vm1199
  %v1201 = vsel %vm1200, %v1193, %v1197
  %v1202 = vand.u32 2147483647, %v1009
  %vm1203 = vcmp.eq.f32.partialorder %v1202, 8.507059e+37
  %v1204 = vand.u32 %v1009, 2147483648
  %v1205 = vor.u32 1.1754944e-38, %v1204
  %v1206 = vsel %vm1203, %v1205, %v1201
  %v1207 = vmul.f32 1.0, %v1206
  %v1208 = vrcp.pop %v1010
  %v1209 = vmul.f32 %v1010, %v1208
  %v1210 = vsub.f32 1.0, %v1209
  %v1211 = vmul.f32 %v1208, %v1210
  %v1212 = vadd.f32 %v1208, %v1211
  %vm1213 = vweird.f32 %v1010
  %vm1214 = vweird.f32 %v1208
  %vm1215 = vmor %vm1213, %vm1214
  %v1216 = vsel %vm1215, %v1208, %v1212
  %v1217 = vand.u32 2147483647, %v1010
  %vm1218 = vcmp.eq.f32.partialorder %v1217, 8.507059e+37
  %v1219 = vand.u32 %v1010, 2147483648
  %v1220 = vor.u32 1.1754944e-38, %v1219
  %v1221 = vsel %vm1218, %v1220, %v1216
  %v1222 = vmul.f32 1.0, %v1221
  %v1223 = vrcp.pop %v1011
  %v1224 = vmul.f32 %v1011, %v1223
  %v1225 = vsub.f32 1.0, %v1224
  %v1226 = vmul.f32 %v1223, %v1225
  %v1227 = vadd.f32 %v1223, %v1226
  %vm1228 = vweird.f32 %v1011
  %vm1229 = vweird.f32 %v1223
  %vm1230 = vmor %vm1228, %vm1229
  %v1231 = vsel %vm1230, %v1223, %v1227
  %v1232 = vand.u32 2147483647, %v1011
  %vm1233 = vcmp.eq.f32.partialorder %v1232, 8.507059e+37
  %v1234 = vand.u32 %v1011, 2147483648
  %v1235 = vor.u32 1.1754944e-38, %v1234
  %v1236 = vsel %vm1233, %v1235, %v1231
  %v1237 = vmul.f32 1.0, %v1236
  %v1238 = vrcp.pop %v1012
  %v1239 = vmul.f32 %v1012, %v1238
  %v1240 = vsub.f32 1.0, %v1239
  %v1241 = vmul.f32 %v1238, %v1240
  %v1242 = vadd.f32 %v1238, %v1241
  %vm1243 = vweird.f32 %v1012
  %vm1244 = vweird.f32 %v1238
  %vm1245 = vmor %vm1243, %vm1244
  %v1246 = vsel %vm1245, %v1238, %v1242
  %v1247 = vand.u32 2147483647, %v1012
  %vm1248 = vcmp.eq.f32.partialorder %v1247, 8.507059e+37
  %v1249 = vand.u32 %v1012, 2147483648
  %v1250 = vor.u32 1.1754944e-38, %v1249
  %v1251 = vsel %vm1248, %v1250, %v1246
  %v1252 = vmul.f32 1.0, %v1251
  %v1253 = vmul.f32 %v1027, 4.0
  %v1254 = vmul.f32 %v1042, 4.0
  %v1255 = vmul.f32 %v1057, 4.0
  %v1256 = vmul.f32 %v1072, 4.0
  %v1257 = vmul.f32 %v1087, 4.0
  %v1258 = vmul.f32 %v1102, 4.0
  %v1259 = vmul.f32 %v1117, 4.0
  %v1260 = vmul.f32 %v1132, 4.0
  %v1261 = vmul.f32 %v1147, 4.0
  %v1262 = vmul.f32 %v1162, 4.0
  %v1263 = vmul.f32 %v1177, 4.0
  %v1264 = vmul.f32 %v1192, 4.0
  %v1265 = vmul.f32 %v1207, 4.0
  %v1266 = vmul.f32 %v1222, 4.0
  %v1267 = vmul.f32 %v1237, 4.0
  %v1268 = vmul.f32 %v1252, 4.0
  %1269 = vxpose.xlu0.b32.start [1/16] %v1253, 128
  %1270 = vxpose.xlu0.b32.cont [2/16] %v1254, 128
  %1271 = vxpose.xlu0.b32.cont [3/16] %v1255, 128
  %1272 = vxpose.xlu0.b32.cont [4/16] %v1256, 128
  %1273 = vxpose.xlu0.b32.cont [5/16] %v1257, 128
  %1274 = vxpose.xlu0.b32.cont [6/16] %v1258, 128
  %1275 = vxpose.xlu0.b32.cont [7/16] %v1259, 128
  %1276 = vxpose.xlu0.b32.cont [8/16] %v1260, 128
  %1277 = vxpose.xlu0.b32.cont [9/16] %v1261, 128
  %1278 = vxpose.xlu0.b32.cont [10/16] %v1262, 128
  %1279 = vxpose.xlu0.b32.cont [11/16] %v1263, 128
  %1280 = vxpose.xlu0.b32.cont [12/16] %v1264, 128
  %1281 = vxpose.xlu0.b32.cont [13/16] %v1265, 128
  %1282 = vxpose.xlu0.b32.cont [14/16] %v1266, 128
  %1283 = vxpose.xlu0.b32.cont [15/16] %v1267, 128
  %1284 = vxpose.xlu0.b32.end [16/16] %v1268, 128
  %v1285 = vpop.trf.xlu0
  %v1286 = vpop.trf.xlu0
  %v1287 = vpop.trf.xlu0
  %v1288 = vpop.trf.xlu0
  %v1289 = vpop.trf.xlu0
  %v1290 = vpop.trf.xlu0
  %v1291 = vpop.trf.xlu0
  %v1292 = vpop.trf.xlu0
  %v1293 = vpop.trf.xlu0
  %v1294 = vpop.trf.xlu0
  %v1295 = vpop.trf.xlu0
  %v1296 = vpop.trf.xlu0
  %v1297 = vpop.trf.xlu0
  %v1298 = vpop.trf.xlu0
  %v1299 = vpop.trf.xlu0
  %v1300 = vpop.trf.xlu0
  %1301 = vst [vmem:[%s7] sm:$0x1] %v1285
  // Predicated region
  $region30: #{listwise_ranknet_forward.1} parent=0 // pred_check
    _
  $region31: #{listwise_ranknet_forward.1} parent=0 // pred_check_branch
    %1303 = sbr.rel (0) target = $region33
  $region32: #{listwise_ranknet_forward.1} parent=0 // pred_region
    _
  $region33: #{listwise_ranknet_forward.1} parent=0 // pred_fallthru
    _
  // Predicated region
  $region34: #{listwise_ranknet_forward.1} parent=0 // pred_check
    _
  $region35: #{listwise_ranknet_forward.1} parent=0 // pred_check_branch
    %1305 = sbr.rel (0) target = $region37
  $region36: #{listwise_ranknet_forward.1} parent=0 // pred_region
    _
  $region37: #{listwise_ranknet_forward.1} parent=0 // pred_fallthru
    _

</llo_original>
